<compile_context>
chip_gen: v7x
topology: tpu7x:2x2x1
jax: 0.10.0
libtpu: 0.0.40
codegen_flags: <defaults>
</compile_context>

<pallas_src>
import functools

import jax
import jax.numpy as jnp
from jax import lax
from jax.experimental import pallas as pl
from jax.experimental.pallas import tpu as pltpu

# Module hyper-parameters (defaults of the PyTorch module).
QUANTILES = (0.1, 0.5, 0.9)
LOW_PENALTY = 15.0
TREND_WEIGHT = 3.0
OFFSET_WEIGHT = 0.3


def _partial_kernel(*refs, quantiles, low_penalty, p50_idx, has_trend, ragged, tb, b_total):
    """Per-batch-tile partial sums.

    refs = (pred_ref_0, ..., pred_ref_{Q-1}, target_ref, trend_mask_ref, out_ref)
      pred_ref_i / target_ref : (tb, Tf) blocks in native dtype (cast to f32 here).
      trend_mask_ref          : (1, Tf) f32; 0.0 at lanes where t % T_orig == 0, else 1.0.
      out_ref                 : (1, 8, 128) f32; lane k of sublane 0 holds partial k:
                                  k in [0, Q) -> sum of weighted pinball error, quantile k
                                  k == Q      -> sum of (target - p50)            (offset)
                                  k == Q + 1  -> sum of |Delta_t (target - p50)|  (trend)
    """
    nq = len(quantiles)
    pred_refs = refs[:nq]
    target_ref = refs[nq]
    tmask_ref = refs[nq + 1]
    out_ref = refs[nq + 2]

    target = target_ref[...].astype(jnp.float32)             # (tb, Tf)

    # Tail-row mask: only compiled in when B % tb != 0 (ragged last block reads
    # undefined padding rows, which must contribute 0 to every partial).
    if ragged:
        valid = b_total - pl.program_id(0) * tb
        row = lax.broadcasted_iota(jnp.int32, (tb, 1), 0)
        row_mask = row < valid
    else:
        row_mask = None

    partials = []
    err50 = None
    for i, q in enumerate(quantiles):
        pred = pred_refs[i][...].astype(jnp.float32)
        error = target - pred
        if row_mask is not None:
            error = jnp.where(row_mask, error, 0.0)           # select; kills OOB garbage/NaN
        # Pinball loss with amplified under-prediction penalty; identical to
        # where(error > 0, error*q*lp, |error|*(1-q)) for q in [0,1], lp >= 0,
        # but uses 2 muls + 1 max instead of cmp/select/abs.
        weighted = jnp.maximum(error * (q * low_penalty), error * (q - 1.0))
        partials.append(jnp.sum(weighted))
        if i == p50_idx:
            err50 = error

    # Offset term reuses the (already masked) p50 error:
    # |mean(p50) - mean(target)| = |sum(err50)| / N.
    partials.append(jnp.sum(err50))

    if has_trend:
        # trend = mean |Delta_t p50 - Delta_t target| = mean |Delta_t err50|.
        # XLU roll + precomputed periodic lane mask (1 mul/elem) instead of
        # unaligned slices or per-tile iota/compare/select.
        shifted = pltpu.roll(err50, shift=1, axis=1)          # shifted[:, t] = err50[:, t-1]
        trend_abs = jnp.abs(err50 - shifted) * tmask_ref[...]
        partials.append(jnp.sum(trend_abs))
    else:
        partials.append(jnp.float32(0.0))

    # Pack the scalar partials into lanes 0..len-1 of sublane 0 of this tile's block.
    row_o = lax.broadcasted_iota(jnp.int32, (1, 8, 128), 1)
    lane_o = lax.broadcasted_iota(jnp.int32, (1, 8, 128), 2)
    block = jnp.zeros((1, 8, 128), jnp.float32)
    for k, s in enumerate(partials):
        block = jnp.where((row_o == 0) & (lane_o == k), s, block)
    out_ref[...] = block


def _vmem_capacity_bytes():
    try:
        info = pltpu.get_tpu_info()
        for name in ("vmem_capacity_bytes", "vmem_size_bytes", "vmem_bytes"):
            val = getattr(info, name, None)
            if val:
                return int(val)
    except Exception:
        pass
    # Fallback from device_kind: v7x has 64 MiB/TC, v5e/v6e have 128 MiB.
    try:
        kind = jax.devices()[0].device_kind.lower()
    except Exception:
        kind = ""
    if "v7" in kind:
        return 64 * 1024 * 1024
    return 128 * 1024 * 1024


def _choose_batch_tile(B, T, Q, itemsize, vmem_cap):
    """Pick the batch-tile size. Returns (tb, ragged).

    tb is a multiple of 8 (or == B when the whole batch is one block).  If no
    multiple-of-8 divisor of B fits, the grid is ragged and the kernel masks the
    tail rows (no jnp.pad HBM pass).
    """
    # Per batch row kept live: (Q+1) double-buffered input streams plus ~6 f32-sized
    # temporaries (error / weighted / err50 / shifted / |diff| / masked trend).
    per_row = T * ((Q + 1) * itemsize * 2 + 6 * 4)
    budget = max(vmem_cap // 3, per_row * 8)
    max_rows = max(8, (budget // max(per_row, 1)) // 8 * 8)
    # Aim for >= ~8 grid steps so double-buffering overlaps DMA with compute
    # (a single giant tile serializes wall = DMA + compute).
    target_rows = max(8, ((-(-B // 8) + 7) // 8) * 8)         # round_up(ceil(B/8), 8)
    tb = min(max_rows, target_rows)
    if B <= tb:
        return B, False                                       # single full-array block
    # Prefer a tile that divides B exactly (no ragged tail to mask).
    t = tb
    while t >= 8:
        if B % t == 0:
            return t, False
        t -= 8
    return tb, True                                           # ragged: mask in kernel


def strong_trend_quantile_loss_slabs(pred_slabs, target,
                                     quantiles=QUANTILES,
                                     low_penalty=LOW_PENALTY,
                                     trend_weight=TREND_WEIGHT,
                                     offset_weight=OFFSET_WEIGHT):
    """Preferred entry. pred_slabs: tuple of Q arrays, each [B, T] (quantile-major);
    target: [B, T].  Producers that can emit quantile-major (and/or bf16) slabs should
    call this directly and skip the [B, T, Q] split pass entirely."""
    pred_slabs = tuple(pred_slabs)
    nq = len(pred_slabs)
    assert nq >= 1 and nq + 2 <= 128
    assert len(quantiles) == nq, "len(quantiles) must match the number of prediction slabs"
    # The max()-form pinball loss used in-kernel is only equivalent to the reference's
    # where/abs form under these conditions.
    assert all(0.0 <= float(q) <= 1.0 for q in quantiles), "quantiles must lie in [0, 1]"
    assert float(low_penalty) >= 0.0, "low_penalty must be >= 0"

    B, T = target.shape
    for s in pred_slabs:
        assert s.shape == (B, T)

    has_trend = T > 1
    # NOTE: the reference module hard-codes the median at index 1 whenever Q >= 2.
    p50_idx = 1 if nq >= 2 else 0

    # Small-T lane folding: reshape [B, T] -> [B/fold, fold*T] (free for row-major
    # data) so blocks are lane-dense.  All sums are order-independent; the trend term
    # uses a periodic mask so folded-row boundaries never pair across batch rows.
    fold = 1
    if T < 128 and B > 1:
        max_fold = max(1, 512 // T)
        for f in range(min(max_fold, B), 1, -1):
            if B % f == 0:
                fold = f
                break
    Bf, Tf = B // fold, fold * T
    if fold > 1:
        pred_slabs = tuple(s.reshape(Bf, Tf) for s in pred_slabs)
        target = target.reshape(Bf, Tf)

    itemsize = max(jnp.dtype(s.dtype).itemsize for s in pred_slabs + (target,))
    vmem_cap = _vmem_capacity_bytes()
    tb, ragged = _choose_batch_tile(Bf, Tf, nq, itemsize, vmem_cap)
    ntiles = -(-Bf // tb)

    # Periodic trend mask: lane j pairs (j, j-1); only valid when both belong to the
    # same original batch row, i.e. j % T != 0 (for fold == 1 that is just lane 0).
    lane_idx = jnp.arange(Tf, dtype=jnp.int32)
    trend_mask = (lane_idx % T != 0).astype(jnp.float32).reshape(1, Tf)

    kernel = functools.partial(
        _partial_kernel,
        quantiles=tuple(float(q) for q in quantiles),
        low_penalty=float(low_penalty),
        p50_idx=p50_idx,
        has_trend=has_trend,
        ragged=ragged,
        tb=tb,
        b_total=Bf,
    )

    data_spec = pl.BlockSpec((tb, Tf), lambda i: (i, 0))
    mask_spec = pl.BlockSpec((1, Tf), lambda i: (0, 0))
    # Tile budget is ~cap/3, so cap/2 leaves >= 16 MiB of headroom for Mosaic scratch.
    vmem_limit = int(max(32 << 20, min(vmem_cap - (16 << 20), vmem_cap // 2)))

    partials = pl.pallas_call(
        kernel,
        grid=(ntiles,),
        out_shape=jax.ShapeDtypeStruct((ntiles, 8, 128), jnp.float32),
        in_specs=[data_spec] * (nq + 1) + [mask_spec],
        out_specs=pl.BlockSpec((1, 8, 128), lambda i: (i, 0, 0)),
        compiler_params=pltpu.CompilerParams(
            dimension_semantics=("parallel",),   # batch tiles are independent
            vmem_limit_bytes=vmem_limit,
        ),
    )(*pred_slabs, target, trend_mask)

    # Tiny finalize: combine raw sums and normalize exactly once.
    sums = jnp.sum(partials[:, 0, :nq + 2], axis=0)          # (Q + 2,)
    n_elems = float(B * T)
    q_losses = sums[:nq] / n_elems
    base_loss = jnp.mean(q_losses)
    offset = jnp.abs(sums[nq]) / n_elems
    trend = sums[nq + 1] / float(B * (T - 1)) if has_trend else jnp.float32(0.0)
    total = base_loss + trend_weight * trend + offset_weight * offset
    return total, [q_losses[i] for i in range(nq)]


def strong_trend_quantile_loss(preds, target,
                               quantiles=QUANTILES,
                               low_penalty=LOW_PENALTY,
                               trend_weight=TREND_WEIGHT,
                               offset_weight=OFFSET_WEIGHT):
    """Module-compatible entry: preds [B, T, Q], target [B, T] (any float dtype).

    The [B, T, Q] -> Q x [B, T] split below is one extra pass over preds; producers
    that already hold quantile-major data should call strong_trend_quantile_loss_slabs
    directly (feeding Q=3 lanes straight to the kernel would be ~2% lane utilization,
    so the kernel intentionally consumes lane-dense [B, T] slabs).
    """
    B, T, Q = preds.shape
    assert target.shape == (B, T)
    assert len(quantiles) == Q, "len(quantiles) must equal preds.shape[-1]"
    slabs = tuple(preds[..., i] for i in range(Q))
    return strong_trend_quantile_loss_slabs(slabs, target, quantiles, low_penalty,
                                            trend_weight, offset_weight)


def _reference(preds, target, quantiles, low_penalty, trend_weight, offset_weight):
    preds = preds.astype(jnp.float32)
    target = target.astype(jnp.float32)
    losses = []
    for i, q in enumerate(quantiles):
        pred_q = preds[..., i]
        error = target - pred_q
        w = jnp.where(error > 0, error * q * low_penalty, jnp.abs(error) * (1.0 - q))
        losses.append(jnp.mean(w))
    base = jnp.mean(jnp.stack(losses))
    p50 = preds[..., 1] if preds.shape[-1] >= 2 else preds[..., 0]
    if p50.shape[1] > 1 and target.shape[1] > 1:
        pred_diff = p50[:, 1:] - p50[:, :-1]
        target_diff = target[:, 1:] - target[:, :-1]
        trend = jnp.mean(jnp.abs(pred_diff - target_diff))
    else:
        trend = jnp.float32(0.0)
    mean_diff = jnp.abs(jnp.mean(p50) - jnp.mean(target))
    return base + trend_weight * trend + offset_weight * mean_diff, losses


if __name__ == "__main__":
    key = jax.random.PRNGKey(0)
    kp, kt, kp2, kt2, kp3, kt3 = jax.random.split(key, 6)

    # Case 1: module-default small shapes (exercises small-T lane folding).
    B, T, Q = 2, 8, 3
    preds = jax.random.normal(kp, (B, T, Q), dtype=jnp.float32)
    target = jax.random.normal(kt, (B, T), dtype=jnp.float32)
    total_loss, losses = strong_trend_quantile_loss(preds, target)
    total_loss = jax.block_until_ready(total_loss)
    ref_total, ref_losses = _reference(preds, target, QUANTILES,
                                       LOW_PENALTY, TREND_WEIGHT, OFFSET_WEIGHT)
    assert jnp.allclose(total_loss, ref_total, rtol=1e-5, atol=1e-5), (total_loss, ref_total)
    for li, ri in zip(losses, ref_losses):
        assert jnp.allclose(li, ri, rtol=1e-5, atol=1e-5), (li, ri)

    # Case 2: ragged batch (B % 8 != 0, T >= 128) -> multi-tile grid with in-kernel
    # tail masking instead of a jnp.pad HBM pass.
    B2, T2 = 20, 128
    preds2 = jax.random.normal(kp2, (B2, T2, Q), dtype=jnp.float32)
    target2 = jax.random.normal(kt2, (B2, T2), dtype=jnp.float32)
    total2, losses2 = strong_trend_quantile_loss(preds2, target2)
    total2 = jax.block_until_ready(total2)
    ref_total2, ref_losses2 = _reference(preds2, target2, QUANTILES,
                                         LOW_PENALTY, TREND_WEIGHT, OFFSET_WEIGHT)
    assert jnp.allclose(total2, ref_total2, rtol=1e-5, atol=1e-5), (total2, ref_total2)
    for li, ri in zip(losses2, ref_losses2):
        assert jnp.allclose(li, ri, rtol=1e-5, atol=1e-5), (li, ri)

    # Case 3: single quantile, single time step (no trend term), bf16 streamed inputs.
    q1 = (0.5,)
    B3, T3 = 5, 1
    preds3 = jax.random.normal(kp3, (B3, T3, 1), dtype=jnp.bfloat16)
    target3 = jax.random.normal(kt3, (B3, T3), dtype=jnp.bfloat16)
    total3, losses3 = strong_trend_quantile_loss(preds3, target3, quantiles=q1)
    total3 = jax.block_until_ready(total3)
    ref_total3, ref_losses3 = _reference(preds3, target3, q1,
                                         LOW_PENALTY, TREND_WEIGHT, OFFSET_WEIGHT)
    assert jnp.allclose(total3, ref_total3, rtol=1e-4, atol=1e-4), (total3, ref_total3)
    for li, ri in zip(losses3, ref_losses3):
        assert jnp.allclose(li, ri, rtol=1e-4, atol=1e-4), (li, ri)

    print("KERNEL_OK")
</pallas_src>

<mosaic_0001>
module attributes {stable_mosaic.version = 11 : i64} {
  func.func @_partial_kernel(%arg0: i32, %arg1: memref<1x16xf32, #tpu.memory_space<vmem>>, %arg2: memref<1x16xf32, #tpu.memory_space<vmem>>, %arg3: memref<1x16xf32, #tpu.memory_space<vmem>>, %arg4: memref<1x16xf32, #tpu.memory_space<vmem>>, %arg5: memref<1x16xf32, #tpu.memory_space<vmem>>, %arg6: memref<1x8x128xf32, #tpu.memory_space<vmem>>) attributes {dimension_semantics = [#tpu.dimension_semantics<parallel>], iteration_bounds = array<i64: 1>, scalar_prefetch = 0 : i64, scratch_operands = 0 : i64, tpu.core_type = #tpu.core_type<tc>, window_params = [{transform_indices = @transform_0, window_bounds = array<i64: 1, 16>}, {transform_indices = @transform_1, window_bounds = array<i64: 1, 16>}, {transform_indices = @transform_2, window_bounds = array<i64: 1, 16>}, {transform_indices = @transform_3, window_bounds = array<i64: 1, 16>}, {pipeline_mode = #tpu.pipeline_mode<synchronous>, transform_indices = @transform_4, window_bounds = array<i64: 1, 16>}, {transform_indices = @transform_5, window_bounds = array<i64: 1, 8, 128>}]} {
    %c0 = arith.constant 0 : index
    %c0_0 = arith.constant 0 : index
    %0 = vector.load %arg4[%c0, %c0_0] : memref<1x16xf32, #tpu.memory_space<vmem>>, vector<1x16xf32>
    %c0_1 = arith.constant 0 : index
    %c0_2 = arith.constant 0 : index
    %1 = vector.load %arg1[%c0_1, %c0_2] : memref<1x16xf32, #tpu.memory_space<vmem>>, vector<1x16xf32>
    %2 = arith.subf %0, %1 : vector<1x16xf32>
    %cst = arith.constant 1.500000e+00 : f32
    %3 = vector.broadcast %cst : f32 to vector<1x16xf32>
    %4 = arith.mulf %2, %3 : vector<1x16xf32>
    %cst_3 = arith.constant -0.899999976 : f32
    %5 = vector.broadcast %cst_3 : f32 to vector<1x16xf32>
    %6 = arith.mulf %2, %5 : vector<1x16xf32>
    %7 = arith.maximumf %4, %6 : vector<1x16xf32>
    %8 = vector.shape_cast %7 : vector<1x16xf32> to vector<1x1x16xf32>
    %cst_4 = arith.constant dense<0.000000e+00> : vector<1xf32>
    %9 = vector.multi_reduction <add>, %8, %cst_4 [1, 2] : vector<1x1x16xf32> to vector<1xf32>
    %10 = vector.shape_cast %9 : vector<1xf32> to vector<1x1x1xf32>
    %11 = vector.extract %10[0, 0, 0] : f32 from vector<1x1x1xf32>
    %c0_5 = arith.constant 0 : index
    %c0_6 = arith.constant 0 : index
    %12 = vector.load %arg2[%c0_5, %c0_6] : memref<1x16xf32, #tpu.memory_space<vmem>>, vector<1x16xf32>
    %13 = arith.subf %0, %12 : vector<1x16xf32>
    %cst_7 = arith.constant 7.500000e+00 : f32
    %14 = vector.broadcast %cst_7 : f32 to vector<1x16xf32>
    %15 = arith.mulf %13, %14 : vector<1x16xf32>
    %cst_8 = arith.constant -5.000000e-01 : f32
    %16 = vector.broadcast %cst_8 : f32 to vector<1x16xf32>
    %17 = arith.mulf %13, %16 : vector<1x16xf32>
    %18 = arith.maximumf %15, %17 : vector<1x16xf32>
    %19 = vector.shape_cast %18 : vector<1x16xf32> to vector<1x1x16xf32>
    %cst_9 = arith.constant dense<0.000000e+00> : vector<1xf32>
    %20 = vector.multi_reduction <add>, %19, %cst_9 [1, 2] : vector<1x1x16xf32> to vector<1xf32>
    %21 = vector.shape_cast %20 : vector<1xf32> to vector<1x1x1xf32>
    %22 = vector.extract %21[0, 0, 0] : f32 from vector<1x1x1xf32>
    %c0_10 = arith.constant 0 : index
    %c0_11 = arith.constant 0 : index
    %23 = vector.load %arg3[%c0_10, %c0_11] : memref<1x16xf32, #tpu.memory_space<vmem>>, vector<1x16xf32>
    %24 = arith.subf %0, %23 : vector<1x16xf32>
    %cst_12 = arith.constant 1.350000e+01 : f32
    %25 = vector.broadcast %cst_12 : f32 to vector<1x16xf32>
    %26 = arith.mulf %24, %25 : vector<1x16xf32>
    %cst_13 = arith.constant -1.000000e-01 : f32
    %27 = vector.broadcast %cst_13 : f32 to vector<1x16xf32>
    %28 = arith.mulf %24, %27 : vector<1x16xf32>
    %29 = arith.maximumf %26, %28 : vector<1x16xf32>
    %30 = vector.shape_cast %29 : vector<1x16xf32> to vector<1x1x16xf32>
    %cst_14 = arith.constant dense<0.000000e+00> : vector<1xf32>
    %31 = vector.multi_reduction <add>, %30, %cst_14 [1, 2] : vector<1x1x16xf32> to vector<1xf32>
    %32 = vector.shape_cast %31 : vector<1xf32> to vector<1x1x1xf32>
    %33 = vector.extract %32[0, 0, 0] : f32 from vector<1x1x1xf32>
    %34 = vector.shape_cast %13 : vector<1x16xf32> to vector<1x1x16xf32>
    %cst_15 = arith.constant dense<0.000000e+00> : vector<1xf32>
    %35 = vector.multi_reduction <add>, %34, %cst_15 [1, 2] : vector<1x1x16xf32> to vector<1xf32>
    %36 = vector.shape_cast %35 : vector<1xf32> to vector<1x1x1xf32>
    %37 = vector.extract %36[0, 0, 0] : f32 from vector<1x1x1xf32>
    %c1_i32 = arith.constant 1 : i32
    %38 = tpu.dynamic_rotate %13 by %c1_i32 dim 1 : vector<1x16xf32>, i32 -> vector<1x16xf32>
    %39 = arith.subf %13, %38 : vector<1x16xf32>
    %40 = math.absf %39 : vector<1x16xf32>
    %c0_16 = arith.constant 0 : index
    %c0_17 = arith.constant 0 : index
    %41 = vector.load %arg5[%c0_16, %c0_17] : memref<1x16xf32, #tpu.memory_space<vmem>>, vector<1x16xf32>
    %42 = arith.mulf %40, %41 : vector<1x16xf32>
    %43 = vector.shape_cast %42 : vector<1x16xf32> to vector<1x1x16xf32>
    %cst_18 = arith.constant dense<0.000000e+00> : vector<1xf32>
    %44 = vector.multi_reduction <add>, %43, %cst_18 [1, 2] : vector<1x1x16xf32> to vector<1xf32>
    %45 = vector.shape_cast %44 : vector<1xf32> to vector<1x1x1xf32>
    %46 = vector.extract %45[0, 0, 0] : f32 from vector<1x1x1xf32>
    %47 = tpu.iota {dimensions = array<i32: 1>} : vector<1x8x128xi32>
    %48 = tpu.iota {dimensions = array<i32: 2>} : vector<1x8x128xi32>
    %cst_19 = arith.constant 0.000000e+00 : f32
    %49 = vector.broadcast %cst_19 : f32 to vector<1x8x128xf32>
    %c0_i32 = arith.constant 0 : i32
    %50 = vector.broadcast %c0_i32 : i32 to vector<1x8x128xi32>
    %51 = arith.cmpi eq, %47, %50 : vector<1x8x128xi32>
    %c0_i32_20 = arith.constant 0 : i32
    %52 = vector.broadcast %c0_i32_20 : i32 to vector<1x8x128xi32>
    %53 = arith.cmpi eq, %48, %52 : vector<1x8x128xi32>
    %54 = arith.andi %51, %53 : vector<1x8x128xi1>
    %55 = vector.broadcast %11 : f32 to vector<1x8x128xf32>
    %56 = arith.select %54, %55, %49 : vector<1x8x128xi1>, vector<1x8x128xf32>
    %c0_i32_21 = arith.constant 0 : i32
    %57 = vector.broadcast %c0_i32_21 : i32 to vector<1x8x128xi32>
    %58 = arith.cmpi eq, %47, %57 : vector<1x8x128xi32>
    %c1_i32_22 = arith.constant 1 : i32
    %59 = vector.broadcast %c1_i32_22 : i32 to vector<1x8x128xi32>
    %60 = arith.cmpi eq, %48, %59 : vector<1x8x128xi32>
    %61 = arith.andi %58, %60 : vector<1x8x128xi1>
    %62 = vector.broadcast %22 : f32 to vector<1x8x128xf32>
    %63 = arith.select %61, %62, %56 : vector<1x8x128xi1>, vector<1x8x128xf32>
    %c0_i32_23 = arith.constant 0 : i32
    %64 = vector.broadcast %c0_i32_23 : i32 to vector<1x8x128xi32>
    %65 = arith.cmpi eq, %47, %64 : vector<1x8x128xi32>
    %c2_i32 = arith.constant 2 : i32
    %66 = vector.broadcast %c2_i32 : i32 to vector<1x8x128xi32>
    %67 = arith.cmpi eq, %48, %66 : vector<1x8x128xi32>
    %68 = arith.andi %65, %67 : vector<1x8x128xi1>
    %69 = vector.broadcast %33 : f32 to vector<1x8x128xf32>
    %70 = arith.select %68, %69, %63 : vector<1x8x128xi1>, vector<1x8x128xf32>
    %c0_i32_24 = arith.constant 0 : i32
    %71 = vector.broadcast %c0_i32_24 : i32 to vector<1x8x128xi32>
    %72 = arith.cmpi eq, %47, %71 : vector<1x8x128xi32>
    %c3_i32 = arith.constant 3 : i32
    %73 = vector.broadcast %c3_i32 : i32 to vector<1x8x128xi32>
    %74 = arith.cmpi eq, %48, %73 : vector<1x8x128xi32>
    %75 = arith.andi %72, %74 : vector<1x8x128xi1>
    %76 = vector.broadcast %37 : f32 to vector<1x8x128xf32>
    %77 = arith.select %75, %76, %70 : vector<1x8x128xi1>, vector<1x8x128xf32>
    %c0_i32_25 = arith.constant 0 : i32
    %78 = vector.broadcast %c0_i32_25 : i32 to vector<1x8x128xi32>
    %79 = arith.cmpi eq, %47, %78 : vector<1x8x128xi32>
    %c4_i32 = arith.constant 4 : i32
    %80 = vector.broadcast %c4_i32 : i32 to vector<1x8x128xi32>
    %81 = arith.cmpi eq, %48, %80 : vector<1x8x128xi32>
    %82 = arith.andi %79, %81 : vector<1x8x128xi1>
    %83 = vector.broadcast %46 : f32 to vector<1x8x128xf32>
    %84 = arith.select %82, %83, %77 : vector<1x8x128xi1>, vector<1x8x128xf32>
    %c0_26 = arith.constant 0 : index
    %c0_27 = arith.constant 0 : index
    %c0_28 = arith.constant 0 : index
    %85 = vector.load %arg6[%c0_26, %c0_27, %c0_28] : memref<1x8x128xf32, #tpu.memory_space<vmem>>, vector<1x8x128xf32>
    tpu.vector_store %arg6[%c0_26, %c0_27, %c0_28], %84 {strides = array<i32>} : memref<1x8x128xf32, #tpu.memory_space<vmem>>, vector<1x8x128xf32>,
    return
  }
  func.func @transform_0(%arg0: i32) -> (i32, i32) {
    %c0_i32 = arith.constant 0 : i32
    %c0_i32_0 = arith.constant 0 : i32
    return %arg0, %c0_i32 : i32, i32
  }
  func.func @transform_1(%arg0: i32) -> (i32, i32) {
    %c0_i32 = arith.constant 0 : i32
    %c0_i32_0 = arith.constant 0 : i32
    return %arg0, %c0_i32 : i32, i32
  }
  func.func @transform_2(%arg0: i32) -> (i32, i32) {
    %c0_i32 = arith.constant 0 : i32
    %c0_i32_0 = arith.constant 0 : i32
    return %arg0, %c0_i32 : i32, i32
  }
  func.func @transform_3(%arg0: i32) -> (i32, i32) {
    %c0_i32 = arith.constant 0 : i32
    %c0_i32_0 = arith.constant 0 : i32
    return %arg0, %c0_i32 : i32, i32
  }
  func.func @transform_4(%arg0: i32) -> (i32, i32) {
    %c0_i32 = arith.constant 0 : i32
    %c0_i32_0 = arith.constant 0 : i32
    %c0_i32_1 = arith.constant 0 : i32
    return %c0_i32, %c0_i32_0 : i32, i32
  }
  func.func @transform_5(%arg0: i32) -> (i32, i32, i32) {
    %c0_i32 = arith.constant 0 : i32
    %c0_i32_0 = arith.constant 0 : i32
    %c0_i32_1 = arith.constant 0 : i32
    return %arg0, %c0_i32, %c0_i32_0 : i32, i32, i32
  }
}

</mosaic_0001>

<llo_original>
// kernel: tpu_custom_call.1
$region0: #{tpu_custom_call.1}
  #allocation0 [shape = 'u32[]', space=smem, size = 0x4, offset = 0x4, fixed_abs, tag = 'smem constant byte address 0x4 - core index']
  #allocation1 [shape = 'u32[144,128]{1,0:T(1,128)}', space=vmem, size = 0x12000, scoped, tag = 'internal scratch']
  %s0 = inlined_call_operand.hbm [shape: f32[1,16], index: 0, kind: input, shape index: {}]
  %s1 = inlined_call_operand.hbm [shape: f32[1,16], index: 1, kind: input, shape index: {}]
  %s2 = inlined_call_operand.hbm [shape: f32[1,16], index: 2, kind: input, shape index: {}]
  %s3 = inlined_call_operand.hbm [shape: f32[1,16], index: 3, kind: input, shape index: {}]
  %s4 = inlined_call_operand.hbm [shape: f32[1,16], index: 4, kind: input, shape index: {}]
  %s5 = inlined_call_operand.hbm [shape: f32[1,8,128], index: 5, kind: output, shape index: {}]
  %s6 = sld [smem:[#allocation0]]
  $region50: #{tpu_custom_call.1} parent=0
    _
  %s8 = ssub.s32 1, %s6
  %s9 = scalar_select 0, %s8, %s6
  $region1: #{tpu_custom_call.1} parent=0
    #allocation2 [shape = 'u8[512]{0}', space=vmem, size = 0x400, scoped, tag = 'input window, operand 0, single buffered']
    #allocation3 [shape = 's32[1]{0}', space=sflag, size = 0x4, scoped, tag = 'scoped memory for tpu_custom_call.1']
    #allocation4 [shape = 's32[1]{0}', space=sflag, size = 0x4, scoped, tag = 'scoped memory for tpu_custom_call.1']
    #allocation5 [shape = 'u8[512]{0}', space=vmem, size = 0x400, scoped, tag = 'input window, operand 1, single buffered']
    #allocation6 [shape = 's32[1]{0}', space=sflag, size = 0x4, scoped, tag = 'scoped memory for tpu_custom_call.1']
    #allocation7 [shape = 'u8[512]{0}', space=vmem, size = 0x400, scoped, tag = 'input window, operand 2, single buffered']
    #allocation8 [shape = 'u8[512]{0}', space=vmem, size = 0x400, scoped, tag = 'input window, operand 3, single buffered']
    #allocation9 [shape = 's32[1]{0}', space=sflag, size = 0x4, scoped, tag = 'scoped memory for tpu_custom_call.1']
    #allocation10 [shape = 'u8[512]{0}', space=vmem, size = 0x400, scoped, tag = 'input window, operand 4, single buffered']
    #allocation11 [shape = 'u8[4096]{0}', space=vmem, size = 0x1000, scoped, tag = 'output window, operand 0, single buffered']
    %10 = vsyncpa [#allocation3], 0
    %11 = vsyncpa [#allocation6], 0
    %12 = vsyncpa [#allocation9], 0
    %13 = vsyncpa [#allocation4], 0
    // Predicated region
    $region2: #{tpu_custom_call.1} parent=1 // pred_check
      _
    $region3: #{tpu_custom_call.1} parent=1 // pred_check_branch
      %15 = sbr.rel (0) target = $region5
    $region4: #{tpu_custom_call.1} parent=1 // pred_region
      %s17 = ssub.s32 16, 16
      %18 = vsyncadd [#allocation3], %s17
      %s20 = sshll.u32 [#allocation2], 4
      %s21 = int_to_ptr.vmem [resolvable:$true] %s20
      %23 = dma.hbm_to_vmem [thread:$0]  %s0, 16, %s21, [#allocation3]
    $region5: #{tpu_custom_call.1} parent=1 // pred_fallthru
      _
    // Predicated region
    $region6: #{tpu_custom_call.1} parent=1 // pred_check
      _
    $region7: #{tpu_custom_call.1} parent=1 // pred_check_branch
      %25 = sbr.rel (0) target = $region9
    $region8: #{tpu_custom_call.1} parent=1 // pred_region
      %s27 = ssub.s32 16, 16
      %28 = vsyncadd [#allocation6], %s27
      %s30 = sshll.u32 [#allocation5], 4
      %s31 = int_to_ptr.vmem [resolvable:$true] %s30
      %33 = dma.hbm_to_vmem [thread:$0]  %s1, 16, %s31, [#allocation6]
    $region9: #{tpu_custom_call.1} parent=1 // pred_fallthru
      _
    // Predicated region
    $region10: #{tpu_custom_call.1} parent=1 // pred_check
      _
    $region11: #{tpu_custom_call.1} parent=1 // pred_check_branch
      %35 = sbr.rel (0) target = $region13
    $region12: #{tpu_custom_call.1} parent=1 // pred_region
      %s37 = ssub.s32 16, 16
      %38 = vsyncadd [#allocation6], %s37
      %s40 = sshll.u32 [#allocation7], 4
      %s41 = int_to_ptr.vmem [resolvable:$true] %s40
      %43 = dma.hbm_to_vmem [thread:$0]  %s2, 16, %s41, [#allocation6]
    $region13: #{tpu_custom_call.1} parent=1 // pred_fallthru
      _
    // Predicated region
    $region14: #{tpu_custom_call.1} parent=1 // pred_check
      _
    $region15: #{tpu_custom_call.1} parent=1 // pred_check_branch
      %45 = sbr.rel (0) target = $region17
    $region16: #{tpu_custom_call.1} parent=1 // pred_region
      %s47 = ssub.s32 16, 16
      %48 = vsyncadd [#allocation9], %s47
      %s50 = sshll.u32 [#allocation8], 4
      %s51 = int_to_ptr.vmem [resolvable:$true] %s50
      %53 = dma.hbm_to_vmem [thread:$0]  %s3, 16, %s51, [#allocation9]
    $region17: #{tpu_custom_call.1} parent=1 // pred_fallthru
      _
    // Predicated region
    $region18: #{tpu_custom_call.1} parent=1 // pred_check
      _
    $region19: #{tpu_custom_call.1} parent=1 // pred_check_branch
      %55 = sbr.rel (0) target = $region21
    $region20: #{tpu_custom_call.1} parent=1 // pred_region
      %s57 = ssub.s32 16, 16
      %58 = vsyncadd [#allocation9], %s57
      %s60 = sshll.u32 [#allocation10], 4
      %s61 = int_to_ptr.vmem [resolvable:$true] %s60
      %63 = dma.hbm_to_vmem [thread:$0]  %s4, 16, %s61, [#allocation9]
    $region21: #{tpu_custom_call.1} parent=1 // pred_fallthru
      _
    // Predicated region
    $region22: #{tpu_custom_call.1} parent=1 // pred_check
      _
    $region23: #{tpu_custom_call.1} parent=1 // pred_check_branch
      %65 = sbr.rel (0) target = $region25
    $region24: #{tpu_custom_call.1} parent=1 // pred_region
      %66 = dma.done [#allocation3], 16
    $region25: #{tpu_custom_call.1} parent=1 // pred_fallthru
      _
    // Predicated region
    $region26: #{tpu_custom_call.1} parent=1 // pred_check
      _
    $region27: #{tpu_custom_call.1} parent=1 // pred_check_branch
      %68 = sbr.rel (0) target = $region29
    $region28: #{tpu_custom_call.1} parent=1 // pred_region
      %69 = dma.done [#allocation6], 16
    $region29: #{tpu_custom_call.1} parent=1 // pred_fallthru
      _
    // Predicated region
    $region30: #{tpu_custom_call.1} parent=1 // pred_check
      _
    $region31: #{tpu_custom_call.1} parent=1 // pred_check_branch
      %71 = sbr.rel (0) target = $region33
    $region32: #{tpu_custom_call.1} parent=1 // pred_region
      %72 = dma.done [#allocation6], 16
    $region33: #{tpu_custom_call.1} parent=1 // pred_fallthru
      _
    // Predicated region
    $region34: #{tpu_custom_call.1} parent=1 // pred_check
      _
    $region35: #{tpu_custom_call.1} parent=1 // pred_check_branch
      %74 = sbr.rel (0) target = $region37
    $region36: #{tpu_custom_call.1} parent=1 // pred_region
      %75 = dma.done [#allocation9], 16
    $region37: #{tpu_custom_call.1} parent=1 // pred_fallthru
      _
    // Predicated region
    $region38: #{tpu_custom_call.1} parent=1 // pred_check
      _
    $region39: #{tpu_custom_call.1} parent=1 // pred_check_branch
      %77 = sbr.rel (0) target = $region41
    $region40: #{tpu_custom_call.1} parent=1 // pred_region
      %78 = dma.done [#allocation9], 16
    $region41: #{tpu_custom_call.1} parent=1 // pred_fallthru
      _
    %v79 = vld [vmem:[#allocation8] sm:$0x1]
    %v80 = vld [vmem:[#allocation2] sm:$0x1]
    %v81 = vsub.f32 %v79, %v80
    %v82 = vmul.f32 %v81, 1.5
    %v83 = vmul.f32 %v81, -0.9
    %v84 = vmax.f32 %v82, %v83
    %vm85 = vcmask 122880
    %v86 = vsel %vm85, %v84, 0.0
    %87 = vadd.xlane.f32.xlu0 %v86
    %v88 = vpop.xlane.xlu0 %87
    %v89 = vrot.slane %v88, 4
    %v90 = vadd.f32 %v88, %v89
    %v91 = vrot.slane %v90, 2
    %v92 = vadd.f32 %v90, %v91
    %v93 = vrot.slane %v92, 1
    %v94 = vadd.f32 %v92, %v93
    %s95 = vtos %v94
    %v96 = vld [vmem:[#allocation5] sm:$0x1]
    %v97 = vsub.f32 %v79, %v96
    %v98 = vmul.f32 %v97, 7.5
    %v99 = vmul.f32 %v97, -0.5
    %v100 = vmax.f32 %v98, %v99
    %v101 = vsel %vm85, %v100, 0.0
    %102 = vadd.xlane.f32.xlu0 %v101
    %v103 = vpop.xlane.xlu0 %102
    %v104 = vrot.slane %v103, 4
    %v105 = vadd.f32 %v103, %v104
    %v106 = vrot.slane %v105, 2
    %v107 = vadd.f32 %v105, %v106
    %v108 = vrot.slane %v107, 1
    %v109 = vadd.f32 %v107, %v108
    %s110 = vtos %v109
    %v111 = vld [vmem:[#allocation7] sm:$0x1]
    %v112 = vsub.f32 %v79, %v111
    %v113 = vmul.f32 %v112, 13.5
    %v114 = vmul.f32 %v112, -0.1
    %v115 = vmax.f32 %v113, %v114
    %v116 = vsel %vm85, %v115, 0.0
    %117 = vadd.xlane.f32.xlu0 %v116
    %v118 = vpop.xlane.xlu0 %117
    %v119 = vrot.slane %v118, 4
    %v120 = vadd.f32 %v118, %v119
    %v121 = vrot.slane %v120, 2
    %v122 = vadd.f32 %v120, %v121
    %v123 = vrot.slane %v122, 1
    %v124 = vadd.f32 %v122, %v123
    %s125 = vtos %v124
    %v126 = vsel %vm85, %v97, 0.0
    %127 = vadd.xlane.f32.xlu0 %v126
    %v128 = vpop.xlane.xlu0 %127
    %v129 = vrot.slane %v128, 4
    %v130 = vadd.f32 %v128, %v129
    %v131 = vrot.slane %v130, 2
    %v132 = vadd.f32 %v130, %v131
    %v133 = vrot.slane %v132, 1
    %v134 = vadd.f32 %v132, %v133
    %s135 = vtos %v134
    %vm136 = vcmask 1047680
    %137 = vrot.lane.b32.xlu0 %v97, 16
    %v138 = vpop.permute.xlu0 %137
    %v139 = vsel %vm136, %v138, %v97
    %140 = vrot.lane.b32.xlu0 %v139, 16
    %v141 = vpop.permute.xlu0 %140
    %v142 = vsel %vm136, %v141, %v97
    %v145 = vunpack.c.l.s4 1966171168
    %v146 = vunpack.c.0.s8 %v145
    %v147 = vlaneseq
    %v148 = vshrl.u32 %v147, 7
    %v149 = vsub.s32 %v146, %v148
    %v150 = vrot.slane %v142, %v149
    %v152 = vunpack.c.l.s4 1966171168
    %v153 = vunpack.c.0.s8 %v152
    %v154 = vlaneseq
    %v155 = vshrl.u32 %v154, 7
    %v156 = vsub.s32 %v153, %v155
    %v157 = vrot.slane %v150, %v156
    %158 = vrot.lane.b32.xlu0 %v157, 113
    %v159 = vpop.permute.xlu0 %158
    %v161 = vsub.f32 %v97, %v159
    %v162 = vand.u32 2147483647, %v161
    %v163 = vld [vmem:[#allocation10] sm:$0x1]
    %v164 = vmul.f32 %v162, %v163
    %v165 = vsel %vm85, %v164, 0.0
    %166 = vadd.xlane.f32.xlu0 %v165
    %v167 = vpop.xlane.xlu0 %166
    %v168 = vrot.slane %v167, 4
    %v169 = vadd.f32 %v167, %v168
    %v170 = vrot.slane %v169, 2
    %v171 = vadd.f32 %v169, %v170
    %v172 = vrot.slane %v171, 1
    %v173 = vadd.f32 %v171, %v172
    %s174 = vtos %v173
    %v175 = vlaneseq
    %v176 = vshrl.u32 %v175, 7
    %v177 = vlaneseq
    %v178 = vand.u32 %v177, 127
    %vm179 = vcmp.eq.s32.totalorder %v176, 0
    %vm180 = vcmp.eq.s32.totalorder %v178, 0
    %vm181 = vmand %vm179, %vm180
    %v182 = vstv %s95
    %v183 = vsel %vm181, %v182, 0.0
    %vm184 = vcmp.eq.s32.totalorder %v178, 1
    %vm185 = vmand %vm179, %vm184
    %v186 = vstv %s110
    %v187 = vsel %vm185, %v186, %v183
    %vm188 = vcmp.eq.s32.totalorder %v178, 2
    %vm189 = vmand %vm179, %vm188
    %v190 = vstv %s125
    %v191 = vsel %vm189, %v190, %v187
    %vm192 = vcmp.eq.s32.totalorder %v178, 3
    %vm193 = vmand %vm179, %vm192
    %v194 = vstv %s135
    %v195 = vsel %vm193, %v194, %v191
    %vm196 = vcmp.eq.s32.totalorder %v178, 4
    %vm197 = vmand %vm179, %vm196
    %v198 = vstv %s174
    %v199 = vsel %vm197, %v198, %v195
    %200 = vst [vmem:[#allocation11] sm:$0xff] %v199
    // Predicated region
    $region42: #{tpu_custom_call.1} parent=1 // pred_check
      _
    $region43: #{tpu_custom_call.1} parent=1 // pred_check_branch
      %202 = sbr.rel (0) target = $region45
    $region44: #{tpu_custom_call.1} parent=1 // pred_region
      %s204 = ssub.s32 128, 128
      %205 = vsyncadd [#allocation4], %s204
      %s207 = sshll.u32 [#allocation11], 4
      %s208 = int_to_ptr.vmem [resolvable:$true] %s207
      %210 = dma.vmem_to_hbm [thread:$0]  %s208, 128, %s5, [#allocation4]
    $region45: #{tpu_custom_call.1} parent=1 // pred_fallthru
      _
    // Predicated region
    $region46: #{tpu_custom_call.1} parent=1 // pred_check
      _
    $region47: #{tpu_custom_call.1} parent=1 // pred_check_branch
      %212 = sbr.rel (0) target = $region49
    $region48: #{tpu_custom_call.1} parent=1 // pred_region
      %213 = dma.done [#allocation4], 128
    $region49: #{tpu_custom_call.1} parent=1 // pred_fallthru
      _
    %214 = vsyncpa [#allocation3], 1
    %215 = vsyncpa [#allocation6], 1
    %216 = vsyncpa [#allocation9], 1
    %217 = vsyncpa [#allocation4], 1

</llo_original>
